<compile_context>
chip_gen: v7x
topology: tpu7x:2x2x1
jax: 0.10.0
libtpu: 0.0.40
codegen_flags: <defaults>
</compile_context>

<pallas_src>
import jax
import jax.numpy as jnp
from jax.experimental import pallas as pl
from jax.experimental.pallas import tpu as pltpu

_LANE = 128
# Per-block byte budget for the tiled path. in + out double-buffered
# => ~4 * _BLOCK_BYTES = 8 MiB of scoped VMEM.
_BLOCK_BYTES = 2 << 20
# Below this combined input size, both tensors go through one fused,
# grid-less pallas_call (fixed launch cost dominates at these sizes).
_SMALL_FUSED_BYTES = 512 << 10
# Explicit scoped-VMEM limit: safe on v5e (128 MiB phys), v6e, v7x (64 MiB phys).
_VMEM_LIMIT_BYTES = 32 << 20


def _sublane(dtype) -> int:
    # dtype-aware sublane packing: 8 rows for 4-byte, 16 for bf16, 32 for int8/fp8.
    return max(8, 32 // max(1, jnp.dtype(dtype).itemsize))


def _round_up(v: int, m: int) -> int:
    return (v + m - 1) // m * m


def _as_2d(a: jax.Array) -> jax.Array:
    """Collapse to a lane-dense 2-D (rows, cols) view.  Pure metadata reshape
    for contiguous row-major arrays -> no extra HBM traffic."""
    if a.ndim == 0:
        return a.reshape(1, 1)
    if a.ndim == 1:
        n = a.shape[0]
        # Fold a 1-D array into a lane-dense 2-D shape when possible so the
        # row axis is tileable.
        for cols in (8192, 4096, 2048, 1024, 512, 256, _LANE):
            if n % cols == 0 and n >= cols:
                return a.reshape(n // cols, cols)
        return a.reshape(1, n)
    shape = a.shape
    split = a.ndim - 1
    cols = shape[-1]
    # Fold trailing dims into the lane axis until it is reasonably lane-dense.
    while split > 1 and cols < 4 * _LANE:
        split -= 1
        cols *= shape[split]
    rows = 1
    for d in shape[:split]:
        rows *= d
    return a.reshape(rows, cols)


def _relu_kernel(x_ref, o_ref):
    o_ref[...] = jnp.maximum(x_ref[...], jnp.zeros((), x_ref.dtype))


def _fused_relu_kernel(x_ref, y_ref, ox_ref, oy_ref):
    # Both tiny tensors in a single launch: one pipeline warm-up/drain.
    ox_ref[...] = jnp.maximum(x_ref[...], jnp.zeros((), x_ref.dtype))
    oy_ref[...] = jnp.maximum(y_ref[...], jnp.zeros((), y_ref.dtype))


def _relu_fused_small(x: jax.Array, y: jax.Array):
    """Single grid-less pallas_call computing ReLU of both (tiny) tensors."""
    x2, y2 = _as_2d(x), _as_2d(y)
    ox2, oy2 = pl.pallas_call(
        _fused_relu_kernel,
        out_shape=(
            jax.ShapeDtypeStruct(x2.shape, x2.dtype),
            jax.ShapeDtypeStruct(y2.shape, y2.dtype),
        ),
    )(x2, y2)
    return ox2.reshape(x.shape), oy2.reshape(y.shape)


def _pick_blocks(rows: int, cols: int, dtype) -> tuple[int, int]:
    """Choose a (block_rows, block_cols) tile of ~_BLOCK_BYTES that is legal
    ((8,128)-aligned or full-extent), lane-dense, and yields >= 2 grid blocks
    whenever the tensor is splittable (so both v7x TCs get work)."""
    sub = _sublane(dtype)
    itemsize = jnp.dtype(dtype).itemsize

    # --- column (lane) tiling ---
    if cols * itemsize * sub <= _BLOCK_BYTES or cols % _LANE != 0:
        # One sublane-group of full rows fits, or cols is not lane-tileable
        # (must use the full extent then).
        # TODO(synk): a huge last axis that is not a multiple of 128 cannot be
        # lane-tiled without padding; such shapes fall back to full-extent cols.
        block_cols = cols
    else:
        block_cols = max(_LANE, (_BLOCK_BYTES // (sub * itemsize)) // _LANE * _LANE)
        block_cols = min(block_cols, cols)

    # --- row (sublane) tiling ---
    target_rows = max(sub, (_BLOCK_BYTES // max(1, block_cols * itemsize)) // sub * sub)
    block_rows = min(target_rows, rows)
    if block_rows < rows:
        # Prefer a divisor of rows (avoids a masked partial last block).
        best = block_rows
        cand = block_rows
        while cand >= max(sub, block_rows // 2):
            if rows % cand == 0:
                best = cand
                break
            cand -= sub
        block_rows = best

    # --- guarantee >= 2 blocks so both v7x TensorCores participate ---
    if pl.cdiv(rows, block_rows) * pl.cdiv(cols, block_cols) == 1:
        if rows >= 2 * sub:
            block_rows = _round_up(pl.cdiv(rows, 2), sub)
        elif cols >= 2 * _LANE and cols % _LANE == 0:
            block_cols = _round_up(pl.cdiv(cols, 2), _LANE)

    return block_rows, block_cols


def _relu_tiled(a: jax.Array) -> jax.Array:
    """Tiled ReLU: ~2 MiB lane-dense blocks, 2-D parallel grid, pipelined DMA."""
    a2 = _as_2d(a)
    rows, cols = a2.shape
    block_rows, block_cols = _pick_blocks(rows, cols, a2.dtype)
    grid = (pl.cdiv(rows, block_rows), pl.cdiv(cols, block_cols))

    out2 = pl.pallas_call(
        _relu_kernel,
        out_shape=jax.ShapeDtypeStruct((rows, cols), a2.dtype),
        grid=grid,
        in_specs=[pl.BlockSpec((block_rows, block_cols), lambda i, j: (i, j))],
        out_specs=pl.BlockSpec((block_rows, block_cols), lambda i, j: (i, j)),
        compiler_params=pltpu.CompilerParams(
            dimension_semantics=("parallel", "parallel"),
            vmem_limit_bytes=_VMEM_LIMIT_BYTES,
        ),
    )(a2)
    return out2.reshape(a.shape)


def model_forward(x: jax.Array, y: jax.Array):
    """Forward pass matching the PyTorch Model.forward semantics.

    F.dropout2d(..., training=False) is the identity and z is discarded, so
    the whole module reduces to (relu(x), relu(y))."""
    total_bytes = (x.size * jnp.dtype(x.dtype).itemsize
                   + y.size * jnp.dtype(y.dtype).itemsize)
    if total_bytes <= _SMALL_FUSED_BYTES:
        # Truly tiny tensors: one fused Pallas launch (launch cost dominates).
        return _relu_fused_small(x, y)
    # Larger tensors: bandwidth-bound pipelined tiled path, one call per tensor.
    return _relu_tiled(x), _relu_tiled(y)


if __name__ == "__main__":
    key = jax.random.PRNGKey(0)
    kx, ky, kb, kw = jax.random.split(key, 4)

    # Small NCHW inputs consistent with dropout2d's expected 4-D layout.
    x = jax.random.normal(kx, (2, 4, 16, 16), dtype=jnp.float32)
    y = jax.random.normal(ky, (2, 3, 12, 16), dtype=jnp.float32)

    out_x, out_y = model_forward(x, y)
    jax.block_until_ready((out_x, out_y))

    # Reference check against plain JAX (relu is the full semantics here).
    ref_x = jnp.maximum(x, 0.0)
    ref_y = jnp.maximum(y, 0.0)
    assert out_x.shape == x.shape and out_y.shape == y.shape
    assert jnp.allclose(out_x, ref_x)
    assert jnp.allclose(out_y, ref_y)

    # Coverage: row-tiled multi-block path (8 MiB, grid (4, 1)).
    big = jax.random.normal(kb, (8, 64, 64, 64), dtype=jnp.float32)
    out_big = _relu_tiled(big)
    jax.block_until_ready(out_big)
    assert jnp.allclose(out_big, jnp.maximum(big, 0.0))

    # Coverage: lane-tiled path for a very wide 2-D input (4 MiB, grid (1, 2)).
    wide = jax.random.normal(kw, (8, 131072), dtype=jnp.float32)
    out_wide = _relu_tiled(wide)
    jax.block_until_ready(out_wide)
    assert jnp.allclose(out_wide, jnp.maximum(wide, 0.0))

    print("KERNEL_OK")
</pallas_src>

<mosaic_0001>
module attributes {stable_mosaic.version = 11 : i64} {
  func.func @_fused_relu_kernel(%arg0: memref<2x1024xf32, #tpu.memory_space<vmem>>, %arg1: memref<2x576xf32, #tpu.memory_space<vmem>>, %arg2: memref<2x1024xf32, #tpu.memory_space<vmem>>, %arg3: memref<2x576xf32, #tpu.memory_space<vmem>>) attributes {dimension_semantics = [], scalar_prefetch = 0 : i64, scratch_operands = 0 : i64, tpu.core_type = #tpu.core_type<tc>} {
    %c0 = arith.constant 0 : index
    %c0_0 = arith.constant 0 : index
    %0 = vector.load %arg0[%c0, %c0_0] : memref<2x1024xf32, #tpu.memory_space<vmem>>, vector<2x1024xf32>
    %cst = arith.constant 0.000000e+00 : f32
    %1 = vector.broadcast %cst : f32 to vector<2x1024xf32>
    %2 = arith.maximumf %0, %1 : vector<2x1024xf32>
    %c0_1 = arith.constant 0 : index
    %c0_2 = arith.constant 0 : index
    %3 = vector.load %arg2[%c0_1, %c0_2] : memref<2x1024xf32, #tpu.memory_space<vmem>>, vector<2x1024xf32>
    tpu.vector_store %arg2[%c0_1, %c0_2], %2 {strides = array<i32>} : memref<2x1024xf32, #tpu.memory_space<vmem>>, vector<2x1024xf32>,
    %c0_3 = arith.constant 0 : index
    %c0_4 = arith.constant 0 : index
    %4 = vector.load %arg1[%c0_3, %c0_4] : memref<2x576xf32, #tpu.memory_space<vmem>>, vector<2x576xf32>
    %cst_5 = arith.constant 0.000000e+00 : f32
    %5 = vector.broadcast %cst_5 : f32 to vector<2x576xf32>
    %6 = arith.maximumf %4, %5 : vector<2x576xf32>
    %c0_6 = arith.constant 0 : index
    %c0_7 = arith.constant 0 : index
    %7 = vector.load %arg3[%c0_6, %c0_7] : memref<2x576xf32, #tpu.memory_space<vmem>>, vector<2x576xf32>
    tpu.vector_store %arg3[%c0_6, %c0_7], %6 {strides = array<i32>} : memref<2x576xf32, #tpu.memory_space<vmem>>, vector<2x576xf32>,
    return
  }
}

</mosaic_0001>

<llo_original>
// kernel: tpu_custom_call.1
$region0: #{tpu_custom_call.1}
  #allocation0 [shape = 'u32[]', space=smem, size = 0x4, offset = 0x4, fixed_abs, tag = 'smem constant byte address 0x4 - core index']
  #allocation1 [shape = 'u32[144,128]{1,0:T(1,128)}', space=vmem, size = 0x12000, scoped, tag = 'internal scratch']
  %s0 = inlined_call_operand.hbm [shape: f32[2,1024], index: 0, kind: input, shape index: {}]
  %s1 = inlined_call_operand.hbm [shape: f32[2,576], index: 1, kind: input, shape index: {}]
  %s2 = inlined_call_operand.hbm [shape: f32[2,1024], index: 2, kind: output, shape index: {0}]
  %s3 = inlined_call_operand.hbm [shape: f32[2,576], index: 3, kind: output, shape index: {1}]
  %4 = xla_tuple %s2, %s3
  %s5 = sld [smem:[#allocation0]]
  $region34: #{tpu_custom_call.1} parent=0
    _
  %s7 = ssub.s32 1, %s5
  %s8 = scalar_select 0, %s7, %s5
  $region1: #{tpu_custom_call.1} parent=0
    #allocation2 [shape = 'u8[8192]{0}', space=vmem, size = 0x2000, scoped, tag = 'input window, operand 0, single buffered']
    #allocation3 [shape = 's32[1]{0}', space=sflag, size = 0x4, scoped, tag = 'scoped memory for tpu_custom_call.1']
    #allocation4 [shape = 's32[1]{0}', space=sflag, size = 0x4, scoped, tag = 'scoped memory for tpu_custom_call.1']
    #allocation5 [shape = 'u8[5120]{0}', space=vmem, size = 0x1400, scoped, tag = 'input window, operand 1, single buffered']
    #allocation6 [shape = 's32[1]{0}', space=sflag, size = 0x4, scoped, tag = 'scoped memory for tpu_custom_call.1']
    #allocation7 [shape = 'u8[8192]{0}', space=vmem, size = 0x2000, scoped, tag = 'output window, operand 0, single buffered']
    #allocation8 [shape = 'u8[5120]{0}', space=vmem, size = 0x1400, scoped, tag = 'output window, operand 1, single buffered']
    #allocation9 [shape = 's32[1]{0}', space=sflag, size = 0x4, scoped, tag = 'scoped memory for tpu_custom_call.1']
    %9 = vsyncpa [#allocation3], 0
    %10 = vsyncpa [#allocation6], 0
    %11 = vsyncpa [#allocation4], 0
    %12 = vsyncpa [#allocation9], 0
    // Predicated region
    $region2: #{tpu_custom_call.1} parent=1 // pred_check
      _
    $region3: #{tpu_custom_call.1} parent=1 // pred_check_branch
      %14 = sbr.rel (0) target = $region5
    $region4: #{tpu_custom_call.1} parent=1 // pred_region
      %s16 = ssub.s32 256, 256
      %17 = vsyncadd [#allocation3], %s16
      %s19 = sshll.u32 [#allocation2], 4
      %s20 = int_to_ptr.vmem [resolvable:$true] %s19
      %22 = dma.hbm_to_vmem [thread:$0]  %s0, 256, %s20, [#allocation3]
    $region5: #{tpu_custom_call.1} parent=1 // pred_fallthru
      _
    // Predicated region
    $region6: #{tpu_custom_call.1} parent=1 // pred_check
      _
    $region7: #{tpu_custom_call.1} parent=1 // pred_check_branch
      %24 = sbr.rel (0) target = $region9
    $region8: #{tpu_custom_call.1} parent=1 // pred_region
      %s26 = ssub.s32 160, 160
      %27 = vsyncadd [#allocation6], %s26
      %s29 = sshll.u32 [#allocation5], 4
      %s30 = int_to_ptr.vmem [resolvable:$true] %s29
      %32 = dma.hbm_to_vmem [thread:$0]  %s1, 160, %s30, [#allocation6]
    $region9: #{tpu_custom_call.1} parent=1 // pred_fallthru
      _
    // Predicated region
    $region10: #{tpu_custom_call.1} parent=1 // pred_check
      _
    $region11: #{tpu_custom_call.1} parent=1 // pred_check_branch
      %34 = sbr.rel (0) target = $region13
    $region12: #{tpu_custom_call.1} parent=1 // pred_region
      %35 = dma.done [#allocation3], 256
    $region13: #{tpu_custom_call.1} parent=1 // pred_fallthru
      _
    // Predicated region
    $region14: #{tpu_custom_call.1} parent=1 // pred_check
      _
    $region15: #{tpu_custom_call.1} parent=1 // pred_check_branch
      %37 = sbr.rel (0) target = $region17
    $region16: #{tpu_custom_call.1} parent=1 // pred_region
      %38 = dma.done [#allocation6], 160
    $region17: #{tpu_custom_call.1} parent=1 // pred_fallthru
      _
    %v39 = vld [vmem:[#allocation2] sm:$0xff]
    %v40 = vld [vmem:[#allocation2 + $0x8] sm:$0xff]
    %v41 = vmax.f32 %v39, 0.0
    %v42 = vmax.f32 %v40, 0.0
    %43 = vst [vmem:[#allocation7] sm:$0xff] %v41
    %44 = vst [vmem:[#allocation7 + $0x8] sm:$0xff] %v42
    %v45 = vld [vmem:[#allocation5] sm:$0xff]
    %v46 = vld [vmem:[#allocation5 + $0x8] sm:$0x3]
    %v47 = vmax.f32 %v45, 0.0
    %v48 = vmax.f32 %v46, 0.0
    %49 = vst [vmem:[#allocation8] sm:$0xff] %v47
    %vm50 = vcmask 517120
    %51 = vst.msk [vmem:[#allocation8 + $0x8] sm:$0x3] %vm50, %v48
    // Predicated region
    $region18: #{tpu_custom_call.1} parent=1 // pred_check
      _
    $region19: #{tpu_custom_call.1} parent=1 // pred_check_branch
      %53 = sbr.rel (0) target = $region21
    $region20: #{tpu_custom_call.1} parent=1 // pred_region
      %s55 = ssub.s32 256, 256
      %56 = vsyncadd [#allocation4], %s55
      %s58 = sshll.u32 [#allocation7], 4
      %s59 = int_to_ptr.vmem [resolvable:$true] %s58
      %61 = dma.vmem_to_hbm [thread:$0]  %s59, 256, %s2, [#allocation4]
    $region21: #{tpu_custom_call.1} parent=1 // pred_fallthru
      _
    // Predicated region
    $region22: #{tpu_custom_call.1} parent=1 // pred_check
      _
    $region23: #{tpu_custom_call.1} parent=1 // pred_check_branch
      %63 = sbr.rel (0) target = $region25
    $region24: #{tpu_custom_call.1} parent=1 // pred_region
      %s65 = ssub.s32 160, 160
      %66 = vsyncadd [#allocation9], %s65
      %s68 = sshll.u32 [#allocation8], 4
      %s69 = int_to_ptr.vmem [resolvable:$true] %s68
      %71 = dma.vmem_to_hbm [thread:$0]  %s69, 160, %s3, [#allocation9]
    $region25: #{tpu_custom_call.1} parent=1 // pred_fallthru
      _
    // Predicated region
    $region26: #{tpu_custom_call.1} parent=1 // pred_check
      _
    $region27: #{tpu_custom_call.1} parent=1 // pred_check_branch
      %73 = sbr.rel (0) target = $region29
    $region28: #{tpu_custom_call.1} parent=1 // pred_region
      %74 = dma.done [#allocation4], 256
    $region29: #{tpu_custom_call.1} parent=1 // pred_fallthru
      _
    // Predicated region
    $region30: #{tpu_custom_call.1} parent=1 // pred_check
      _
    $region31: #{tpu_custom_call.1} parent=1 // pred_check_branch
      %76 = sbr.rel (0) target = $region33
    $region32: #{tpu_custom_call.1} parent=1 // pred_region
      %77 = dma.done [#allocation9], 160
    $region33: #{tpu_custom_call.1} parent=1 // pred_fallthru
      _
    %78 = vsyncpa [#allocation3], 1
    %79 = vsyncpa [#allocation6], 1
    %80 = vsyncpa [#allocation4], 1
    %81 = vsyncpa [#allocation9], 1

</llo_original>
